<compile_context>
chip_gen: v6e
topology: v6e:2x2x1
jax: 0.10.0
libtpu: 0.0.40
codegen_flags: <defaults>
</compile_context>

<pallas_src>
import jax
import jax.numpy as jnp
from jax.experimental import pallas as pl
from jax.experimental.pallas import tpu as pltpu


def _round_up(n: int, m: int) -> int:
    return ((n + m - 1) // m) * m


def _choose_tiling(M: int, tile_m_target: int = 512):
    """Adaptive M-tiling: >=2 tiles when possible (v7x megacore), even tile
    count, tile_m near the 512-row HBM-roofline sweet spot, <=~8 rows/tile
    of padding."""
    num_tiles = max(1, pl.cdiv(M, tile_m_target))
    if M >= 16:
        num_tiles = max(num_tiles, 2)        # keep both v7x TensorCores busy
    if num_tiles > 1 and num_tiles % 2:
        num_tiles += 1                       # balanced split across 2 cores
    tile_m = _round_up(pl.cdiv(M, num_tiles), 8)
    m_pad = tile_m * num_tiles
    return tile_m, num_tiles, m_pad


def _buf_bytes(rows: int, cols: int, itemsize: int) -> int:
    # One VMEM buffer, including (8, 128) layout padding.
    return _round_up(rows, 8) * _round_up(cols, 128) * itemsize


def ddpm_loss_kernel(x_ref, noise_ref, sched_ref,   # (tile_m, D), (tile_m, D), (tile_m, 3)
                     w_ref, btw_ref,                # (D, D) bf16, (2, D) f32
                     out_ref):                      # (1, 1, D) partial SSE
    x = x_ref[...].astype(jnp.float32)
    nz = noise_ref[...].astype(jnp.float32)

    sched = sched_ref[...]                  # (tile_m, 3) f32: [sqrtab, sqrtmab, t/n_T]
    sa = sched[:, 0:1]
    sm = sched[:, 1:2]
    tf = sched[:, 2:3]

    # forward diffusion (f32, VPU)
    x_t = sa * x + sm * nz

    # nn_model(x_t, t): time-conditioned linear head on the MXU.
    # bf16 operands only at the dot; f32 accumulation.
    pred = jnp.dot(x_t.astype(w_ref.dtype), w_ref[...],
                   preferred_element_type=jnp.float32)
    pred = pred + btw_ref[0:1, :] + tf * btw_ref[1:2, :]

    # MSE numerator contribution of this tile: sublane (row) reduce only,
    # lanes stay dense.  Final reduce + mean happen in the wrapper.
    diff = nz - pred
    out_ref[...] = jnp.sum(diff * diff, axis=0, keepdims=True)[None]


def _stream_dtype(dt):
    dt = jnp.dtype(dt)
    if dt in (jnp.dtype(jnp.float32), jnp.dtype(jnp.bfloat16)):
        return dt
    return jnp.dtype(jnp.float32)


def ddpm_forward(x, noise, ts, sqrtab, sqrtmab, n_T, W, bias, t_w, *, tile_m_target=512):
    B, C, D = x.shape
    M = B * C

    # Per-batch schedule gathers (tiny) in plain JAX, packed into one (M, 3)
    # column block so the kernel streams a single skinny input per step.
    sa = sqrtab[ts].astype(jnp.float32)
    sm = sqrtmab[ts].astype(jnp.float32)
    tf = ts.astype(jnp.float32) / jnp.float32(n_T)
    sched = jnp.repeat(jnp.stack([sa, sm, tf], axis=-1), C, axis=0)   # (M, 3)

    # Stream x / noise in their incoming dtype (f32 or bf16); never add a
    # wrapper down-cast pass for f32 inputs (extra HBM round trip).
    x_dt = _stream_dtype(x.dtype)
    n_dt = _stream_dtype(noise.dtype)
    x2 = x.reshape(M, D).astype(x_dt)
    n2 = noise.reshape(M, D).astype(n_dt)

    tile_m, num_tiles, m_pad = _choose_tiling(M, tile_m_target)
    pad_rows = m_pad - M
    if pad_rows:
        x2 = jnp.pad(x2, ((0, pad_rows), (0, 0)))
        n2 = jnp.pad(n2, ((0, pad_rows), (0, 0)))
        sched = jnp.pad(sched, ((0, pad_rows), (0, 0)))

    w_bf = W.astype(jnp.bfloat16)                               # cast once (MXU operand)
    btw = jnp.stack([bias, t_w], axis=0).astype(jnp.float32)    # (2, D), resident

    # VMEM budget: 2x double-buffered streams + schedule + resident W/btw + out.
    est = 2 * (_buf_bytes(tile_m, D, x_dt.itemsize)
               + _buf_bytes(tile_m, D, n_dt.itemsize)
               + _buf_bytes(tile_m, 3, 4)
               + _buf_bytes(D, D, 2)
               + _buf_bytes(2, D, 4)
               + _buf_bytes(1, D, 4))
    vmem_limit = None
    if est > 14 * (1 << 20):
        # Tight against v5e's 16 MiB scoped default -> raise explicitly,
        # staying well under v7x's 64 MiB physical VMEM.
        vmem_limit = int(min(56 * (1 << 20), est + (4 << 20)))

    partials = pl.pallas_call(
        ddpm_loss_kernel,
        out_shape=jax.ShapeDtypeStruct((num_tiles, 1, D), jnp.float32),
        grid_spec=pltpu.PrefetchScalarGridSpec(
            num_scalar_prefetch=0,
            grid=(num_tiles,),
            in_specs=[
                pl.BlockSpec((tile_m, D), lambda i: (i, 0)),   # x rows
                pl.BlockSpec((tile_m, D), lambda i: (i, 0)),   # noise rows
                pl.BlockSpec((tile_m, 3), lambda i: (i, 0)),   # [sqrtab, sqrtmab, t/n_T]
                pl.BlockSpec((D, D),      lambda i: (0, 0)),   # W (resident, bf16)
                pl.BlockSpec((2, D),      lambda i: (0, 0)),   # [bias; t_w] (resident)
            ],
            out_specs=pl.BlockSpec((1, 1, D), lambda i: (i, 0, 0)),
        ),
        compiler_params=pltpu.CompilerParams(
            dimension_semantics=("parallel",),
            vmem_limit_bytes=vmem_limit,
        ),
    )(x2, n2, sched, w_bf, btw)

    # Finalize in the wrapper: cross-tile + cross-lane reduce, remove the
    # deterministic padded-row contribution (padded rows give diff == -bias),
    # then the mean.
    sse = jnp.sum(partials)
    if pad_rows:
        sse = sse - jnp.float32(pad_rows) * jnp.sum(bias.astype(jnp.float32) ** 2)
    return sse / jnp.float32(M * D)


def reference_forward(x, noise, ts, sqrtab, sqrtmab, n_T, W, bias, t_w):
    sa = sqrtab[ts][:, None, None]
    sm = sqrtmab[ts][:, None, None]
    x_t = sa * x + sm * noise
    t = (ts.astype(jnp.float32) / n_T)[:, None, None]
    pred = jnp.einsum("bcd,de->bce", x_t, W) + bias[None, None, :] + t * t_w[None, None, :]
    return jnp.mean((noise - pred) ** 2)


if __name__ == "__main__":
    # Small shapes consistent with the module (x is 3-D so the (B,1,1) schedule
    # broadcast matches).  C=9 makes M=18 -> 2 tiles of 16 rows, exercising
    # both the multi-tile (megacore) path and the padded-row correction.
    B, C, D = 2, 9, 128
    n_T = 10

    key = jax.random.PRNGKey(0)
    kx, kn, kt, kw, kb, ktw = jax.random.split(key, 6)

    x = jax.random.normal(kx, (B, C, D), dtype=jnp.float32)
    noise = jax.random.normal(kn, (B, C, D), dtype=jnp.float32)
    ts = jax.random.randint(kt, (B,), 1, n_T)          # torch.randint(1, n_T, (B,))
    W = jax.random.normal(kw, (D, D), dtype=jnp.float32) * 0.02
    bias = jax.random.normal(kb, (D,), dtype=jnp.float32) * 0.01
    t_w = jax.random.normal(ktw, (D,), dtype=jnp.float32) * 0.01

    # DDPM schedule buffers (the module only registers alpha_t=[1.0,1.5]; the
    # forward uses sqrtab / sqrtmab, so build the standard linear-beta schedule).
    beta = jnp.linspace(1e-4, 0.02, n_T + 1, dtype=jnp.float32)
    alphabar = jnp.cumprod(1.0 - beta)
    sqrtab = jnp.sqrt(alphabar)
    sqrtmab = jnp.sqrt(1.0 - alphabar)

    loss = ddpm_forward(x, noise, ts, sqrtab, sqrtmab, n_T, W, bias, t_w)
    loss = jax.block_until_ready(loss)

    ref = reference_forward(x, noise, ts, sqrtab, sqrtmab, n_T, W, bias, t_w)
    assert jnp.isfinite(loss)
    # bf16 MXU operands (f32 accumulation) -> allow ~1e-2 relative slack.
    assert jnp.allclose(loss, ref, rtol=1e-2, atol=1e-3), (loss, ref)

    # TODO(synk): DDPM.sample() is an iterative host-side loop (and references
    # oneover_sqrta never registered in __init__); not part of forward(), not kernelized.
    print("KERNEL_OK")
</pallas_src>

<mosaic_0001>
module attributes {stable_mosaic.version = 11 : i64} {
  func.func @ddpm_loss_kernel(%arg0: i32, %arg1: memref<16x128xf32, #tpu.memory_space<vmem>>, %arg2: memref<16x128xf32, #tpu.memory_space<vmem>>, %arg3: memref<16x3xf32, #tpu.memory_space<vmem>>, %arg4: memref<128x128xbf16, #tpu.memory_space<vmem>>, %arg5: memref<2x128xf32, #tpu.memory_space<vmem>>, %arg6: memref<1x1x128xf32, #tpu.memory_space<vmem>>) attributes {dimension_semantics = [#tpu.dimension_semantics<parallel>], iteration_bounds = array<i64: 2>, scalar_prefetch = 0 : i64, scratch_operands = 0 : i64, tpu.core_type = #tpu.core_type<tc>, window_params = [{transform_indices = @transform_0, window_bounds = array<i64: 16, 128>}, {transform_indices = @transform_1, window_bounds = array<i64: 16, 128>}, {transform_indices = @transform_2, window_bounds = array<i64: 16, 3>}, {pipeline_mode = #tpu.pipeline_mode<synchronous>, transform_indices = @transform_3, window_bounds = array<i64: 128, 128>}, {pipeline_mode = #tpu.pipeline_mode<synchronous>, transform_indices = @transform_4, window_bounds = array<i64: 2, 128>}, {transform_indices = @transform_5, window_bounds = array<i64: 1, 1, 128>}]} {
    %c0 = arith.constant 0 : index
    %c0_0 = arith.constant 0 : index
    %0 = vector.load %arg1[%c0, %c0_0] : memref<16x128xf32, #tpu.memory_space<vmem>>, vector<16x128xf32>
    %c0_1 = arith.constant 0 : index
    %c0_2 = arith.constant 0 : index
    %1 = vector.load %arg2[%c0_1, %c0_2] : memref<16x128xf32, #tpu.memory_space<vmem>>, vector<16x128xf32>
    %c0_3 = arith.constant 0 : index
    %c0_4 = arith.constant 0 : index
    %2 = vector.load %arg3[%c0_3, %c0_4] : memref<16x3xf32, #tpu.memory_space<vmem>>, vector<16x3xf32>
    %3 = vector.extract_strided_slice %2 {offsets = [0, 0], sizes = [16, 1], strides = [1, 1]} : vector<16x3xf32> to vector<16x1xf32>
    %4 = vector.extract_strided_slice %2 {offsets = [0, 1], sizes = [16, 1], strides = [1, 1]} : vector<16x3xf32> to vector<16x1xf32>
    %5 = vector.extract_strided_slice %2 {offsets = [0, 2], sizes = [16, 1], strides = [1, 1]} : vector<16x3xf32> to vector<16x1xf32>
    %6 = vector.broadcast %3 : vector<16x1xf32> to vector<16x128xf32>
    %7 = arith.mulf %6, %0 : vector<16x128xf32>
    %8 = vector.broadcast %4 : vector<16x1xf32> to vector<16x128xf32>
    %9 = arith.mulf %8, %1 : vector<16x128xf32>
    %10 = arith.addf %7, %9 : vector<16x128xf32>
    %11 = arith.truncf %10 : vector<16x128xf32> to vector<16x128xbf16>
    %c0_5 = arith.constant 0 : index
    %c0_6 = arith.constant 0 : index
    %12 = vector.load %arg4[%c0_5, %c0_6] : memref<128x128xbf16, #tpu.memory_space<vmem>>, vector<128x128xbf16>
    %cst = arith.constant dense<0.000000e+00> : vector<16x128xf32>
    %13 = tpu.matmul %11, %12, %cst {dimension_numbers = #tpu.dot_dimension_numbers<[1], [0], [0], [1], [0, 0, 1, 1], [], []>} : vector<16x128xbf16>, vector<128x128xbf16>, vector<16x128xf32> -> vector<16x128xf32>
    %c0_7 = arith.constant 0 : index
    %c0_8 = arith.constant 0 : index
    %14 = vector.load %arg5[%c0_7, %c0_8] : memref<2x128xf32, #tpu.memory_space<vmem>>, vector<1x128xf32>
    %15 = vector.broadcast %14 : vector<1x128xf32> to vector<16x128xf32>
    %16 = arith.addf %13, %15 : vector<16x128xf32>
    %c1 = arith.constant 1 : index
    %c0_9 = arith.constant 0 : index
    %17 = vector.load %arg5[%c1, %c0_9] : memref<2x128xf32, #tpu.memory_space<vmem>>, vector<1x128xf32>
    %18 = vector.broadcast %5 : vector<16x1xf32> to vector<16x128xf32>
    %19 = vector.broadcast %17 : vector<1x128xf32> to vector<16x128xf32>
    %20 = arith.mulf %18, %19 : vector<16x128xf32>
    %21 = arith.addf %16, %20 : vector<16x128xf32>
    %22 = arith.subf %1, %21 : vector<16x128xf32>
    %23 = arith.mulf %22, %22 : vector<16x128xf32>
    %cst_10 = arith.constant dense<0.000000e+00> : vector<128xf32>
    %24 = vector.multi_reduction <add>, %23, %cst_10 [0] : vector<16x128xf32> to vector<128xf32>
    %25 = vector.shape_cast %24 : vector<128xf32> to vector<1x128xf32>
    %26 = vector.shape_cast %25 : vector<1x128xf32> to vector<1x1x128xf32>
    %c0_11 = arith.constant 0 : index
    %c0_12 = arith.constant 0 : index
    %c0_13 = arith.constant 0 : index
    %27 = vector.load %arg6[%c0_11, %c0_12, %c0_13] : memref<1x1x128xf32, #tpu.memory_space<vmem>>, vector<1x1x128xf32>
    tpu.vector_store %arg6[%c0_11, %c0_12, %c0_13], %26 {strides = array<i32>} : memref<1x1x128xf32, #tpu.memory_space<vmem>>, vector<1x1x128xf32>,
    return
  }
  func.func @transform_0(%arg0: i32) -> (i32, i32) {
    %c0_i32 = arith.constant 0 : i32
    %c0_i32_0 = arith.constant 0 : i32
    return %arg0, %c0_i32 : i32, i32
  }
  func.func @transform_1(%arg0: i32) -> (i32, i32) {
    %c0_i32 = arith.constant 0 : i32
    %c0_i32_0 = arith.constant 0 : i32
    return %arg0, %c0_i32 : i32, i32
  }
  func.func @transform_2(%arg0: i32) -> (i32, i32) {
    %c0_i32 = arith.constant 0 : i32
    %c0_i32_0 = arith.constant 0 : i32
    return %arg0, %c0_i32 : i32, i32
  }
  func.func @transform_3(%arg0: i32) -> (i32, i32) {
    %c0_i32 = arith.constant 0 : i32
    %c0_i32_0 = arith.constant 0 : i32
    %c0_i32_1 = arith.constant 0 : i32
    return %c0_i32, %c0_i32_0 : i32, i32
  }
  func.func @transform_4(%arg0: i32) -> (i32, i32) {
    %c0_i32 = arith.constant 0 : i32
    %c0_i32_0 = arith.constant 0 : i32
    %c0_i32_1 = arith.constant 0 : i32
    return %c0_i32, %c0_i32_0 : i32, i32
  }
  func.func @transform_5(%arg0: i32) -> (i32, i32, i32) {
    %c0_i32 = arith.constant 0 : i32
    %c0_i32_0 = arith.constant 0 : i32
    %c0_i32_1 = arith.constant 0 : i32
    return %arg0, %c0_i32, %c0_i32_0 : i32, i32, i32
  }
}

</mosaic_0001>

<llo_original>
// kernel: tpu_custom_call.1
$region0: #{tpu_custom_call.1}
  #allocation0 [shape = 'u32[]', space=smem, size = 0x4, offset = 0x4, fixed_abs, tag = 'smem constant byte address 0x4 - core index']
  #allocation1 [shape = 'u32[144,128]{1,0:T(1,128)}', space=vmem, size = 0x12000, scoped, tag = 'internal scratch']
  %s0 = inlined_call_operand.vmem [shape: f32[32,128], index: 0, kind: input, shape index: {}]
  %s1 = inlined_call_operand.hbm [shape: f32[32,128], index: 1, kind: input, shape index: {}]
  %s2 = inlined_call_operand.vmem [shape: f32[32,3], index: 2, kind: input, shape index: {}]
  %s3 = inlined_call_operand.hbm [shape: bf16[128,128], index: 3, kind: input, shape index: {}]
  %s4 = inlined_call_operand.vmem [shape: f32[2,128], index: 4, kind: input, shape index: {}]
  %s5 = inlined_call_operand.hbm [shape: f32[2,1,128], index: 5, kind: output, shape index: {}]
  %s6 = sld [smem:[#allocation0]]
  $region61: #{tpu_custom_call.1} parent=0
    _
  %s8 = ssub.s32 1, %s6
  %s9 = scalar_select 0, %s8, %s6
  $region1: #{tpu_custom_call.1} parent=0
    #allocation2 [shape = 'u8[16384]{0}', space=vmem, size = 0x4000, scoped, tag = 'input window, operand 1']
    #allocation3 [shape = 's32[2]{0}', space=sflag, size = 0x8, scoped, tag = 'scoped memory for tpu_custom_call.1']
    #allocation4 [shape = 's32[2]{0}', space=sflag, size = 0x8, scoped, tag = 'scoped memory for tpu_custom_call.1']
    #allocation5 [shape = 'u8[32768]{0}', space=vmem, size = 0x8000, scoped, tag = 'input window, operand 3, single buffered']
    #allocation6 [shape = 's32[1]{0}', space=sflag, size = 0x4, scoped, tag = 'scoped memory for tpu_custom_call.1']
    #allocation7 [shape = 'u8[1024]{0}', space=vmem, size = 0x400, scoped, tag = 'output window, operand 0']
    %10 = vsyncpa [#allocation3], 0
    %s11 = scalar_lea.sflag [#allocation3], 1
    %12 = vsyncpa %s11, 0
    %13 = vsyncpa [#allocation6], 0
    %14 = vsyncpa [#allocation4], 0
    %s15 = scalar_lea.sflag [#allocation4], 1
    %16 = vsyncpa %s15, 0
    loop: start=0, step=1, limit=4
    $region2: #{tpu_custom_call.1} parent=1 // loop_pre_header
      _
    $region3: #{tpu_custom_call.1} parent=1 // loop_header
      %s18 = sphi 0, %s22
      %p19 = scmp.ge.s32.totalorder %s18, 4
      %s28 = sphi 0, %s30
      %s31 = sphi 0, %s28
      %s32 = sphi 0, %s31
      %s48 = sphi 0, %s32
      %s54 = sphi 0, %s56
      %s57 = sphi 0, %s54
      %s58 = sphi 0, %s57
      %s74 = sphi 0, %s58
      %s80 = sphi 0, %s82
      %s83 = sphi 0, %s80
      %s84 = sphi 0, %s83
      %s100 = sphi 0, %s84
      %s104 = sphi 0, %s104
      %s106 = sphi 0, %s104
      %s107 = sphi 0, %s106
      %s121 = sphi 0, %s107
      %s125 = sphi 0, %s125
      %s127 = sphi 0, %s125
      %s128 = sphi 0, %s127
      %s142 = sphi 0, %s128
      %s148 = sphi 0, %s150
      %s151 = sphi 0, %s148
      %s152 = sphi 0, %s151
      %s168 = sphi 0, %s152
    $region4: #{tpu_custom_call.1} parent=1 // loop_header_branch
      %21 = sbr.rel (%p19) target = $region8
    $region5: #{tpu_custom_call.1} parent=1 // loop_body
      %s23 = ssub.s32 %s18, 1
      %s24 = ssub.s32 %s18, 2
      %s25 = sadd.s32 %s18, 1
      %s26 = ssub.s32 %s18, %s25
      %p27 = scmp.eq.s32.totalorder %s26, 0
      %s29 = sadd.s32 %s28, 1
      %s30 = scalar_select %p27, %s28, %s29
      %p33 = pneg %p27
      %p34 = scmp.eq.s32.totalorder %s18, 1
      %p35 = por %p33, %p34
      %p36 = scmp.ne.s32.totalorder %s28, %s31
      %p37 = scmp.eq.s32.totalorder %s18, 0
      %p38 = por %p36, %p37
      %p39 = scmp.ne.s32.totalorder %s28, %s31
      %p40 = scmp.eq.s32.totalorder %s23, 1
      %p41 = por %p39, %p40
      %p42 = scmp.ne.s32.totalorder %s31, %s32
      %p43 = scmp.eq.s32.totalorder %s23, 0
      %p44 = por %p42, %p43
      %p45 = scmp.ne.s32.totalorder %s31, %s32
      %p46 = scmp.eq.s32.totalorder %s24, 1
      %p47 = por %p45, %p46
      %p49 = scmp.ne.s32.totalorder %s32, %s48
      %p50 = scmp.eq.s32.totalorder %s24, 0
      %p51 = por %p49, %p50
      %s52 = ssub.s32 %s18, %s25
      %p53 = scmp.eq.s32.totalorder %s52, 0
      %s55 = sadd.s32 %s54, 1
      %s56 = scalar_select %p53, %s54, %s55
      %p59 = pneg %p53
      %p60 = scmp.eq.s32.totalorder %s18, 1
      %p61 = por %p59, %p60
      %p62 = scmp.ne.s32.totalorder %s54, %s57
      %p63 = scmp.eq.s32.totalorder %s18, 0
      %p64 = por %p62, %p63
      %p65 = scmp.ne.s32.totalorder %s54, %s57
      %p66 = scmp.eq.s32.totalorder %s23, 1
      %p67 = por %p65, %p66
      %p68 = scmp.ne.s32.totalorder %s57, %s58
      %p69 = scmp.eq.s32.totalorder %s23, 0
      %p70 = por %p68, %p69
      %p71 = scmp.ne.s32.totalorder %s57, %s58
      %p72 = scmp.eq.s32.totalorder %s24, 1
      %p73 = por %p71, %p72
      %p75 = scmp.ne.s32.totalorder %s58, %s74
      %p76 = scmp.eq.s32.totalorder %s24, 0
      %p77 = por %p75, %p76
      %s78 = ssub.s32 %s18, %s25
      %p79 = scmp.eq.s32.totalorder %s78, 0
      %s81 = sadd.s32 %s80, 1
      %s82 = scalar_select %p79, %s80, %s81
      %p85 = pneg %p79
      %p86 = scmp.eq.s32.totalorder %s18, 1
      %p87 = por %p85, %p86
      %p88 = scmp.ne.s32.totalorder %s80, %s83
      %p89 = scmp.eq.s32.totalorder %s18, 0
      %p90 = por %p88, %p89
      %p91 = scmp.ne.s32.totalorder %s80, %s83
      %p92 = scmp.eq.s32.totalorder %s23, 1
      %p93 = por %p91, %p92
      %p94 = scmp.ne.s32.totalorder %s83, %s84
      %p95 = scmp.eq.s32.totalorder %s23, 0
      %p96 = por %p94, %p95
      %p97 = scmp.ne.s32.totalorder %s83, %s84
      %p98 = scmp.eq.s32.totalorder %s24, 1
      %p99 = por %p97, %p98
      %p101 = scmp.ne.s32.totalorder %s84, %s100
      %p102 = scmp.eq.s32.totalorder %s24, 0
      %p103 = por %p101, %p102
      %s105 = sadd.s32 %s104, 1
      %p108 = scmp.eq.s32.totalorder %s18, 1
      %p109 = scmp.ne.s32.totalorder %s104, %s106
      %p110 = scmp.eq.s32.totalorder %s18, 0
      %p111 = por %p109, %p110
      %p112 = scmp.ne.s32.totalorder %s104, %s106
      %p113 = scmp.eq.s32.totalorder %s23, 1
      %p114 = por %p112, %p113
      %p115 = scmp.ne.s32.totalorder %s106, %s107
      %p116 = scmp.eq.s32.totalorder %s23, 0
      %p117 = por %p115, %p116
      %p118 = scmp.ne.s32.totalorder %s106, %s107
      %p119 = scmp.eq.s32.totalorder %s24, 1
      %p120 = por %p118, %p119
      %p122 = scmp.ne.s32.totalorder %s107, %s121
      %p123 = scmp.eq.s32.totalorder %s24, 0
      %p124 = por %p122, %p123
      %s126 = sadd.s32 %s125, 1
      %p129 = scmp.eq.s32.totalorder %s18, 1
      %p130 = scmp.ne.s32.totalorder %s125, %s127
      %p131 = scmp.eq.s32.totalorder %s18, 0
      %p132 = por %p130, %p131
      %p133 = scmp.ne.s32.totalorder %s125, %s127
      %p134 = scmp.eq.s32.totalorder %s23, 1
      %p135 = por %p133, %p134
      %p136 = scmp.ne.s32.totalorder %s127, %s128
      %p137 = scmp.eq.s32.totalorder %s23, 0
      %p138 = por %p136, %p137
      %p139 = scmp.ne.s32.totalorder %s127, %s128
      %p140 = scmp.eq.s32.totalorder %s24, 1
      %p141 = por %p139, %p140
      %p143 = scmp.ne.s32.totalorder %s128, %s142
      %p144 = scmp.eq.s32.totalorder %s24, 0
      %p145 = por %p143, %p144
      %s146 = ssub.s32 %s18, %s25
      %p147 = scmp.eq.s32.totalorder %s146, 0
      %s149 = sadd.s32 %s148, 1
      %s150 = scalar_select %p147, %s148, %s149
      %p153 = pneg %p147
      %p154 = scmp.eq.s32.totalorder %s18, 1
      %p155 = por %p153, %p154
      %p156 = scmp.ne.s32.totalorder %s148, %s151
      %p157 = scmp.eq.s32.totalorder %s18, 0
      %p158 = por %p156, %p157
      %p159 = scmp.ne.s32.totalorder %s148, %s151
      %p160 = scmp.eq.s32.totalorder %s23, 1
      %p161 = por %p159, %p160
      %p162 = scmp.ne.s32.totalorder %s151, %s152
      %p163 = scmp.eq.s32.totalorder %s23, 0
      %p164 = por %p162, %p163
      %p165 = scmp.ne.s32.totalorder %s151, %s152
      %p166 = scmp.eq.s32.totalorder %s24, 1
      %p167 = por %p165, %p166
      %p169 = scmp.ne.s32.totalorder %s152, %s168
      %p170 = scmp.eq.s32.totalorder %s24, 0
      %p171 = por %p169, %p170
      %p172 = scmp.le.s32.totalorder 1, %s18
      %p173 = scmp.lt.s32.totalorder %s18, 3
      %p174 = pnand %p172, %p173
      %p175 = pneg %p174
      // Predicated region
      $region9: #{tpu_custom_call.1} parent=5 // pred_check
        _
      $region10: #{tpu_custom_call.1} parent=5 // pred_check_branch
        %177 = sbr.rel (%p174) target = $region12
      $region11: #{tpu_custom_call.1} parent=5 // pred_region
        %s178 = ssub.s32 %s18, 1
        // Predicated region
        $region13: #{tpu_custom_call.1} parent=11 // pred_check
          %p179 = pneg %p117
        $region14: #{tpu_custom_call.1} parent=11 // pred_check_branch
          %181 = sbr.rel (%p179) target = $region16
        $region15: #{tpu_custom_call.1} parent=11 // pred_region
          %s183 = ssub.s32 1024, 1024
          %184 = vsyncadd [#allocation6], %s183
          %s185 = sshll.u32 [#allocation5], 4
          %s186 = int_to_ptr.vmem [resolvable:$true] %s185
          %191 = dma.hbm_to_vmem [thread:$0]  %s3, 1024, %s186, [#allocation6], 64, 64, 4
        $region16: #{tpu_custom_call.1} parent=11 // pred_fallthru
          _
        // Predicated region
        $region17: #{tpu_custom_call.1} parent=11 // pred_check
          %p192 = pneg %p138
        $region18: #{tpu_custom_call.1} parent=11 // pred_check_branch
          %194 = sbr.rel (%p192) target = $region20
        $region19: #{tpu_custom_call.1} parent=11 // pred_region
          _
        $region20: #{tpu_custom_call.1} parent=11 // pred_fallthru
          _
      $region12: #{tpu_custom_call.1} parent=5 // pred_fallthru
        _
      %p195 = scmp.lt.s32.totalorder %s18, 2
      // Predicated region
      $region21: #{tpu_custom_call.1} parent=5 // pred_check
        %p196 = pneg %p195
      $region22: #{tpu_custom_call.1} parent=5 // pred_check_branch
        %198 = sbr.rel (%p196) target = $region24
      $region23: #{tpu_custom_call.1} parent=5 // pred_region
        // Predicated region
        $region25: #{tpu_custom_call.1} parent=23 // pred_check
          %p199 = pneg %p38
        $region26: #{tpu_custom_call.1} parent=23 // pred_check_branch
          %201 = sbr.rel (%p199) target = $region28
        $region27: #{tpu_custom_call.1} parent=23 // pred_region
          %s202 = smul.u32 2, %s18
          %p203 = scmp.lt.s32.totalorder %s202, 3
          %s204 = scalar_select %p203, %s202, 3
          %s205 = smul.addr %s204, 8
          %s206 = scalar_lea.vmem %s0, %s205
          %s207 = smul.u32 2, %s18
        $region28: #{tpu_custom_call.1} parent=23 // pred_fallthru
          _
        // Predicated region
        $region29: #{tpu_custom_call.1} parent=23 // pred_check
          %p208 = pneg %p64
        $region30: #{tpu_custom_call.1} parent=23 // pred_check_branch
          %210 = sbr.rel (%p208) target = $region32
        $region31: #{tpu_custom_call.1} parent=23 // pred_region
          %s211 = sand.u32 %s54, 1
          %s212 = scalar_lea.sflag [#allocation3], %s211
          %s213 = sand.u32 %s54, 1
          %s214 = smul.addr %s213, 16
          %s215 = scalar_lea.vmem [#allocation2], %s214
          %s216 = smul.u32 2, %s18
          %s218 = ssub.s32 256, 256
          %219 = vsyncadd %s212, %s218
          %s220 = smul.addr %s216, 128
          %s221 = scalar_lea.hbm %s1, %s220
          %s222 = sshll.u32 %s215, 4
          %s223 = int_to_ptr.vmem [resolvable:$true] %s222
          %228 = dma.hbm_to_vmem [thread:$0]  %s221, 256, %s223, %s212, 128, 128, 8
        $region32: #{tpu_custom_call.1} parent=23 // pred_fallthru
          _
        // Predicated region
        $region33: #{tpu_custom_call.1} parent=23 // pred_check
          %p229 = pneg %p90
        $region34: #{tpu_custom_call.1} parent=23 // pred_check_branch
          %231 = sbr.rel (%p229) target = $region36
        $region35: #{tpu_custom_call.1} parent=23 // pred_region
          %s232 = smul.u32 2, %s18
          %p233 = scmp.lt.s32.totalorder %s232, 3
          %s234 = scalar_select %p233, %s232, 3
          %s235 = smul.addr %s234, 8
          %s236 = scalar_lea.vmem %s2, %s235
          %s237 = smul.u32 2, %s18
        $region36: #{tpu_custom_call.1} parent=23 // pred_fallthru
          _
      $region24: #{tpu_custom_call.1} parent=5 // pred_fallthru
        _
      %p238 = scmp.le.s32.totalorder 1, %s18
      %p239 = scmp.lt.s32.totalorder %s18, 3
      %p240 = pnand %p238, %p239
      %p241 = pneg %p240
      // Predicated region
      $region37: #{tpu_custom_call.1} parent=5 // pred_check
        _
      $region38: #{tpu_custom_call.1} parent=5 // pred_check_branch
        %243 = sbr.rel (%p240) target = $region40
      $region39: #{tpu_custom_call.1} parent=5 // pred_region
        %s244 = ssub.s32 %s18, 1
        %s245 = sand.u32 %s57, 1
        %s246 = scalar_lea.sflag [#allocation3], %s245
        %s247 = sand.u32 %s57, 1
        %s248 = smul.addr %s247, 16
        %s249 = scalar_lea.vmem [#allocation2], %s248
        // Predicated region
        $region41: #{tpu_custom_call.1} parent=39 // pred_check
          %p250 = pneg %p70
        $region42: #{tpu_custom_call.1} parent=39 // pred_check_branch
          %252 = sbr.rel (%p250) target = $region44
        $region43: #{tpu_custom_call.1} parent=39 // pred_region
          %253 = dma.done %s246, 256
        $region44: #{tpu_custom_call.1} parent=39 // pred_fallthru
          _
        // Predicated region
        $region45: #{tpu_custom_call.1} parent=39 // pred_check
          %p254 = pneg %p117
        $region46: #{tpu_custom_call.1} parent=39 // pred_check_branch
          %256 = sbr.rel (%p254) target = $region48
        $region47: #{tpu_custom_call.1} parent=39 // pred_region
          %257 = dma.done [#allocation6], 1024
        $region48: #{tpu_custom_call.1} parent=39 // pred_fallthru
          _
        %s258 = smul.u32 2, %s23
        %p259 = scmp.lt.s32.totalorder %s258, 3
        %s260 = scalar_select %p259, %s258, 3
        %s261 = smul.addr %s260, 8
        %s262 = scalar_lea.vmem %s0, %s261
        %p263 = pneg %p44
        %p264 = pneg %p41
        %s265 = sand.u32 %s57, 1
        %s266 = scalar_lea.sflag [#allocation3], %s265
        %s267 = sand.u32 %s57, 1
        %s268 = smul.addr %s267, 16
        %s269 = scalar_lea.vmem [#allocation2], %s268
        %p270 = pneg %p70
        %p271 = pneg %p67
        %s272 = smul.u32 2, %s23
        %p273 = scmp.lt.s32.totalorder %s272, 3
        %s274 = scalar_select %p273, %s272, 3
        %s275 = smul.addr %s274, 8
        %s276 = scalar_lea.vmem %s2, %s275
        %p277 = pneg %p96
        %p278 = pneg %p93
        %p279 = pneg %p117
        %p280 = pneg %p114
        %p281 = pneg %p138
        %p282 = pneg %p135
        %p283 = pneg %p164
        %p284 = pneg %p161
        %s285 = sand.u32 %s151, 1
        %s286 = scalar_lea.sflag [#allocation4], %s285
        %s287 = sand.u32 %s151, 1
        %s288 = scalar_lea.vmem [#allocation7], %s287
        %s289 = smul.u32 2, %s23
        %p290 = scmp.lt.s32.totalorder %s289, 3
        %s291 = scalar_select %p290, %s289, 3
        %s292 = smul.addr %s291, 8
        %s293 = scalar_lea.vmem %s0, %s292
        %s294 = smul.u32 2, %s23
        %s295 = smul.u32 2, %s23
        %s296 = smul.u32 2, %s23
        %p297 = scmp.lt.s32.totalorder %s296, 3
        %s298 = scalar_select %p297, %s296, 3
        %s299 = smul.addr %s298, 8
        %s300 = scalar_lea.vmem %s2, %s299
        %s301 = smul.u32 2, %s23
        %v303 = vld [vmem:[%s293] sm:$0xff]
        %v304 = vld [vmem:[%s293 + $0x8] sm:$0xff]
        %v305 = vld [vmem:[%s249] sm:$0xff]
        %v306 = vld [vmem:[%s249 + $0x8] sm:$0xff]
        %v307 = vld [vmem:[%s300] sm:$0xff]
        %v308 = vld [vmem:[%s300 + $0x8] sm:$0xff]
        %310 = vset.pattern.permute.xlu0 0
        %311 = vperm.xlu0 %310, %v307
        %v312 = vpop.permute.xlu0 %311
        %315 = vset.pattern.permute.xlu0 0
        %316 = vperm.xlu0 %315, %v308
        %v317 = vpop.permute.xlu0 %316
        %v319 = vmul.f32 %v312, %v303
        %v320 = vmul.f32 %v317, %v304
        %321 = vset.pattern.permute.xlu0 1
        %322 = vperm.xlu0 %321, %v307
        %v323 = vpop.permute.xlu0 %322
        %325 = vset.pattern.permute.xlu0 1
        %326 = vperm.xlu0 %325, %v308
        %v327 = vpop.permute.xlu0 %326
        %v329 = vmul.f32 %v323, %v305
        %v330 = vmul.f32 %v327, %v306
        %v331 = vadd.f32 %v319, %v329
        %v332 = vadd.f32 %v320, %v330
        %v333 = vpack.c.bf16 %v332, %v331
        %v334 = vld [vmem:[#allocation5] sm:$0xf]
        %v335 = vld [vmem:[#allocation5 + $0x4] sm:$0xf]
        %v336 = vld [vmem:[#allocation5 + $0x8] sm:$0xf]
        %v337 = vld [vmem:[#allocation5 + $0xc] sm:$0xf]
        %v338 = vld [vmem:[#allocation5 + $0x10] sm:$0xf]
        %v339 = vld [vmem:[#allocation5 + $0x14] sm:$0xf]
        %v340 = vld [vmem:[#allocation5 + $0x18] sm:$0xf]
        %v341 = vld [vmem:[#allocation5 + $0x1c] sm:$0xf]
        %v342 = vld [vmem:[#allocation5 + $0x20] sm:$0xf]
        %v343 = vld [vmem:[#allocation5 + $0x24] sm:$0xf]
        %v344 = vld [vmem:[#allocation5 + $0x28] sm:$0xf]
        %v345 = vld [vmem:[#allocation5 + $0x2c] sm:$0xf]
        %v346 = vld [vmem:[#allocation5 + $0x30] sm:$0xf]
        %v347 = vld [vmem:[#allocation5 + $0x34] sm:$0xf]
        %v348 = vld [vmem:[#allocation5 + $0x38] sm:$0xf]
        %v349 = vld [vmem:[#allocation5 + $0x3c] sm:$0xf]
        %v350 = vld [vmem:[%s4] sm:$0x1]
        %v351 = vlaneseq
        %v352 = vshrl.u32 %v351, 7
        %v353 = vsub.s32 0, %v352
        %v354 = vrot.slane %v350, %v353
        %v371 = vunpack.c.l.b16 %v334
        %v372 = vunpack.c.l.b16 %v335
        %v373 = vunpack.c.l.b16 %v336
        %v374 = vunpack.c.l.b16 %v337
        %v375 = vunpack.c.l.b16 %v338
        %v376 = vunpack.c.l.b16 %v339
        %v377 = vunpack.c.l.b16 %v340
        %v378 = vunpack.c.l.b16 %v341
        %v379 = vunpack.c.l.b16 %v342
        %v380 = vunpack.c.l.b16 %v343
        %v381 = vunpack.c.l.b16 %v344
        %v382 = vunpack.c.l.b16 %v345
        %v383 = vunpack.c.l.b16 %v346
        %v384 = vunpack.c.l.b16 %v347
        %v385 = vunpack.c.l.b16 %v348
        %v386 = vunpack.c.l.b16 %v349
        %v387 = vpack.c.b16 %v372, %v371
        %v388 = vpack.c.b16 %v374, %v373
        %v389 = vpack.c.b16 %v376, %v375
        %v390 = vpack.c.b16 %v378, %v377
        %v391 = vpack.c.b16 %v380, %v379
        %v392 = vpack.c.b16 %v382, %v381
        %v393 = vpack.c.b16 %v384, %v383
        %v394 = vpack.c.b16 %v386, %v385
        %403 = vmatprep.subr.bf16.mxu0 0
        %404 = vmatpush1.bf16.msra.mxu0 %v394
        %405 = vmatprep.subr.bf16.mxu0 0
        %406 = vmatpush1.bf16.msra.mxu0 %v393
        %407 = vmatprep.subr.bf16.mxu0 0
        %408 = vmatpush1.bf16.msra.mxu0 %v392
        %409 = vmatprep.subr.bf16.mxu0 0
        %410 = vmatpush1.bf16.msra.mxu0 %v391
        %411 = vmatprep.subr.bf16.mxu0 0
        %412 = vmatpush1.bf16.msra.mxu0 %v390
        %413 = vmatprep.subr.bf16.mxu0 0
        %414 = vmatpush1.bf16.msra.mxu0 %v389
        %415 = vmatprep.subr.bf16.mxu0 0
        %416 = vmatpush1.bf16.msra.mxu0 %v388
        %417 = vmatprep.subr.bf16.mxu0 0
        %418 = vmatpush1.bf16.msra.mxu0 %v387
        %419 = vmatprep.subr.bf16.mxu0 0
        %420 = vmatpush2.bf16.msra.mxu0 0
        %421 = vmatprep.subr.bf16.mxu0 0
        %422 = vmatpush2.bf16.msra.mxu0 0
        %423 = vmatprep.subr.bf16.mxu0 0
        %424 = vmatpush2.bf16.msra.mxu0 0
        %425 = vmatprep.subr.bf16.mxu0 0
        %426 = vmatpush2.bf16.msra.mxu0 0
        %427 = vmatprep.subr.bf16.mxu0 0
        %428 = vmatpush2.bf16.msra.mxu0 0
        %429 = vmatprep.subr.bf16.mxu0 0
        %430 = vmatpush2.bf16.msra.mxu0 0
        %431 = vmatprep.subr.bf16.mxu0 0
        %432 = vmatpush2.bf16.msra.mxu0 0
        %433 = vmatprep.subr.bf16.mxu0 0
        %434 = vmatpush2.bf16.msra.mxu0 0
        %435 = vmatprep.mubr.bf16.mxu0 0
        %436 = vmatmul.mubr.bf16.gmra.mxu0 %v333
        %v437 = vpop.f32.mrf.mxu0
        %v438 = vadd.f32 %v354, %v437
        %v439 = vpop.f32.mrf.mxu0
        %v440 = vpop.f32.mrf.mxu0
        %v441 = vadd.f32 %v354, %v440
        %v442 = vpop.f32.mrf.mxu0
        %443 = vdwg.mxu0
        %v444 = vld [vmem:[%s4 + $0x1] sm:$0x1]
        %445 = vset.pattern.permute.xlu0 2
        %446 = vperm.xlu0 %445, %v307
        %v447 = vpop.permute.xlu0 %446
        %449 = vset.pattern.permute.xlu0 2
        %450 = vperm.xlu0 %449, %v308
        %v451 = vpop.permute.xlu0 %450
        %v453 = vlaneseq
        %v454 = vshrl.u32 %v453, 7
        %v455 = vsub.s32 0, %v454
        %v456 = vrot.slane %v444, %v455
        %v457 = vmul.f32 %v447, %v456
        %v458 = vmul.f32 %v451, %v456
        %v459 = vadd.f32 %v438, %v457
        %v460 = vadd.f32 %v441, %v458
        %v461 = vsub.f32 %v305, %v459
        %v462 = vsub.f32 %v306, %v460
        %v463 = vmul.f32 %v461, %v461
        %v464 = vmul.f32 %v462, %v462
        %v465 = vadd.f32 %v463, %v464
        %v466 = vrot.slane %v465, 4
        %v467 = vadd.f32 %v465, %v466
        %v468 = vrot.slane %v467, 2
        %v469 = vadd.f32 %v467, %v468
        %v470 = vrot.slane %v469, 1
        %v471 = vadd.f32 %v469, %v470
        %472 = vst [vmem:[%s288] sm:$0x1] %v471
        %s473 = sand.u32 %s151, 1
        %s474 = scalar_lea.sflag [#allocation4], %s473
        %s475 = sand.u32 %s151, 1
        %s476 = scalar_lea.vmem [#allocation7], %s475
        // Predicated region
        $region49: #{tpu_custom_call.1} parent=39 // pred_check
          %p477 = pneg %p161
        $region50: #{tpu_custom_call.1} parent=39 // pred_check_branch
          %479 = sbr.rel (%p477) target = $region52
        $region51: #{tpu_custom_call.1} parent=39 // pred_region
          %s481 = ssub.s32 16, 16
          %482 = vsyncadd %s474, %s481
          %s483 = smul.addr %s23, 16
          %s484 = scalar_lea.hbm %s5, %s483
          %s486 = sshll.u32 %s476, 4
          %s487 = int_to_ptr.vmem [resolvable:$true] %s486
          %489 = dma.vmem_to_hbm [thread:$0]  %s487, 16, %s484, %s474
        $region52: #{tpu_custom_call.1} parent=39 // pred_fallthru
          _
      $region40: #{tpu_custom_call.1} parent=5 // pred_fallthru
        _
      %p490 = scmp.le.s32.totalorder 2, %s18
      // Predicated region
      $region53: #{tpu_custom_call.1} parent=5 // pred_check
        %p491 = pneg %p490
      $region54: #{tpu_custom_call.1} parent=5 // pred_check_branch
        %493 = sbr.rel (%p491) target = $region56
      $region55: #{tpu_custom_call.1} parent=5 // pred_region
        %s494 = ssub.s32 %s18, 2
        // Predicated region
        $region57: #{tpu_custom_call.1} parent=55 // pred_check
          %p495 = pneg %p167
        $region58: #{tpu_custom_call.1} parent=55 // pred_check_branch
          %497 = sbr.rel (%p495) target = $region60
        $region59: #{tpu_custom_call.1} parent=55 // pred_region
          %s498 = sand.u32 %s152, 1
          %s499 = scalar_lea.sflag [#allocation4], %s498
          %s500 = sand.u32 %s152, 1
          %s501 = scalar_lea.vmem [#allocation7], %s500
          %502 = dma.done %s499, 16
        $region60: #{tpu_custom_call.1} parent=55 // pred_fallthru
          _
      $region56: #{tpu_custom_call.1} parent=5 // pred_fallthru
        _
    $region6: #{tpu_custom_call.1} parent=1 // loop_footer
      %s22 = sadd.s32 1, %s18
    $region7: #{tpu_custom_call.1} parent=1 // loop_footer_branch
      %17 = sbr.rel target = $region3
    $region8: #{tpu_custom_call.1} parent=1 // loop_exit
      _
    %503 = vsyncpa [#allocation3], 1
    %s504 = scalar_lea.sflag [#allocation3], 1
    %505 = vsyncpa %s504, 1
    %506 = vsyncpa [#allocation6], 1
    %507 = vsyncpa [#allocation4], 1
    %s508 = scalar_lea.sflag [#allocation4], 1
    %509 = vsyncpa %s508, 1

</llo_original>
